<compile_context>
chip_gen: v6e
topology: v6e:2x2x1
jax: 0.10.0
libtpu: 0.0.40
codegen_flags: <defaults>
</compile_context>

<pallas_src>
import functools
import math

import jax
import jax.numpy as jnp
from jax.experimental import pallas as pl
from jax.experimental.pallas import tpu as pltpu


def _round_up(n, m):
    return ((n + m - 1) // m) * m


def _cdiv(a, b):
    return -(-a // b)


def _choose_tile_blocks(nb, max_tile_b):
    """Pick the per-tile count of 128-lane blocks (the block's sublane dim).

    The second-to-last block dim must be a multiple of 8 or equal the full
    array extent.  We also try to keep >= 2 tiles so v7x's two TensorCores
    both get work on the "parallel" grid axis.
    """
    max_tbb = max(8, _round_up(max_tile_b, 1024) // 128)   # multiple of 8
    half = _round_up(_cdiv(nb, 2), 8)                      # aim for >= 2 tiles
    tbb = min(max_tbb, half)
    if tbb >= nb:            # batch too small to split -> one full-extent tile
        return nb, 1
    return tbb, _cdiv(nb, tbb)


def _mvn_nll_kernel(mean_ref, y_ref, out_ref, *, d):
    """Per-sample NLL for one sublane-dense batch tile.

    mean_ref: (D + T, tbb, 128)  rows 0..D-1   = pred
                                 rows D..2D-1  = diagonal logvar params
                                 rows 2D..     = strict-lower logvar params
                                                 (row-major: (1,0),(2,0),(2,1),...)
    y_ref:    (D, tbb, 128)
    out_ref:  (tbb, 128)        per-sample negative log-likelihood
    """
    x = mean_ref[...].astype(jnp.float32)          # (D+T, tbb, 128)
    y = y_ref[...].astype(jnp.float32)             # (D,   tbb, 128)

    resid = y - x[:d]                              # (D, tbb, 128)

    # Diagonal parameters: each transcendental issued once over the whole slab.
    lii = jax.nn.softplus(jnp.exp(x[d:2 * d]))     # (D, tbb, 128), > 0
    log_lii = jnp.log(lii)
    inv_lii = pl.reciprocal(lii, approx=True)      # EUP vrcp
    inv_lii = inv_lii * (2.0 - lii * inv_lii)      # one Newton-Raphson step

    if d > 1:
        off = jnp.exp(x[2 * d:])                   # (D*(D-1)//2, tbb, 128)

    # Forward substitution  L z = resid.  D is small & static -> fully
    # unrolled; every operand is a full (tbb, 128) slab (leading-dim slice).
    zs = []
    quad = jnp.zeros(resid.shape[1:], jnp.float32)
    for i in range(d):
        acc = resid[i]
        base = i * (i - 1) // 2
        for j in range(i):
            acc = acc - off[base + j] * zs[j]
        zi = acc * inv_lii[i]
        zs.append(zi)
        quad = quad + zi * zi

    half_logdet = jnp.sum(log_lii, axis=0)         # (tbb, 128), cheap VPU adds
    out_ref[...] = 0.5 * (quad + d * math.log(2.0 * math.pi)) + half_logdet


def multivariate_gaussian_loss(mean, y_true, *, max_tile_b=8192):
    """mean: (B, D + D*(D+1)//2) = [pred | row-major tril params]; y_true: (B, D)."""
    b, d = y_true.shape
    t = d * (d + 1) // 2
    t_off = t - d
    assert mean.shape == (b, d + t), (mean.shape, (b, d + t))

    lane = 128
    b_pad = _round_up(b, lane)          # pad only to a lane multiple (cdiv grid)
    nb = b_pad // lane
    tbb, n_tiles = _choose_tile_blocks(nb, max_tile_b)

    mean = jnp.asarray(mean, jnp.float32)
    y_true = jnp.asarray(y_true, jnp.float32)

    # Reorder tril params so the D diagonal rows are contiguous (rows d..2d-1)
    # followed by the strict-lower rows -> slab-wide transcendentals in-kernel.
    diag_idx = jnp.array([i * (i + 1) // 2 + i for i in range(d)], jnp.int32)
    off_idx = jnp.array(
        [i * (i + 1) // 2 + j for i in range(d) for j in range(i)], jnp.int32)
    logvar = mean[:, d:]
    parts = [mean[:, :d], logvar[:, diag_idx]]
    if t_off:
        parts.append(logvar[:, off_idx])
    packed = jnp.concatenate(parts, axis=1)        # (B, D + T), reordered

    # Feature-major, lane-padded, sublane-dense layout.
    # TODO(synk): have the producer emit (D+T, B) directly to skip this pass.
    mean_t = jnp.zeros((d + t, b_pad), jnp.float32).at[:, :b].set(packed.T)
    y_t = jnp.zeros((d, b_pad), jnp.float32).at[:, :b].set(y_true.T)
    mean_t = mean_t.reshape(d + t, nb, lane)
    y_t = y_t.reshape(d, nb, lane)

    kernel = functools.partial(_mvn_nll_kernel, d=d)
    nll = pl.pallas_call(
        kernel,
        out_shape=jax.ShapeDtypeStruct((nb, lane), jnp.float32),
        grid=(n_tiles,),
        in_specs=[
            pl.BlockSpec((d + t, tbb, lane), lambda i: (0, i, 0)),
            pl.BlockSpec((d, tbb, lane), lambda i: (0, i, 0)),
        ],
        out_specs=pl.BlockSpec((tbb, lane), lambda i: (i, 0)),
        compiler_params=pltpu.CompilerParams(
            dimension_semantics=("parallel",)),    # v7x: shard tiles over 2 TCs
    )(mean_t, y_t)

    # Mean over the *real* batch only; padded lanes are finite and sliced off.
    return jnp.sum(nll.reshape(b_pad)[:b]) / b


def _reference_loss(mean, y_true):
    """Pure-JAX reference mirroring the PyTorch module."""
    b, d = y_true.shape
    pred = mean[:, :d]
    tril_vals = jnp.exp(mean[:, d:])
    rows, cols = jnp.tril_indices(d)
    L = jnp.zeros((b, d, d), jnp.float32).at[:, rows, cols].set(tril_vals)
    diag = jax.nn.softplus(jnp.diagonal(L, axis1=-2, axis2=-1))
    Lc = jnp.tril(L, -1) + jax.vmap(jnp.diag)(diag)
    r = (y_true - pred)[..., None]
    z = jax.scipy.linalg.solve_triangular(Lc, r, lower=True)[..., 0]
    quad = jnp.sum(z * z, axis=-1)
    logdet = 2.0 * jnp.sum(jnp.log(diag), axis=-1)
    nll = 0.5 * (quad + logdet + d * math.log(2.0 * math.pi))
    return jnp.mean(nll)


if __name__ == "__main__":
    key = jax.random.PRNGKey(0)

    # Primary small case matching the module: batch=8, output dim=4.
    b, d = 8, 4
    t = d * (d + 1) // 2
    k1, k2, k3, k4 = jax.random.split(key, 4)
    mean = jax.random.normal(k1, (b, d + t), dtype=jnp.float32) * 0.5
    y_true = jax.random.normal(k2, (b, d), dtype=jnp.float32)

    loss = jax.block_until_ready(multivariate_gaussian_loss(mean, y_true))
    ref = _reference_loss(mean, y_true)
    assert jnp.allclose(loss, ref, rtol=1e-4, atol=1e-4), (loss, ref)

    # Secondary check exercising the multi-tile "parallel" grid path.
    b2, d2 = 2048, 3
    t2 = d2 * (d2 + 1) // 2
    mean2 = jax.random.normal(k3, (b2, d2 + t2), dtype=jnp.float32) * 0.5
    y2 = jax.random.normal(k4, (b2, d2), dtype=jnp.float32)
    loss2 = jax.block_until_ready(multivariate_gaussian_loss(mean2, y2))
    ref2 = _reference_loss(mean2, y2)
    assert jnp.allclose(loss2, ref2, rtol=1e-4, atol=1e-4), (loss2, ref2)

    print("KERNEL_OK")
</pallas_src>

<mosaic_0001>
module attributes {stable_mosaic.version = 11 : i64} {
  func.func @_mvn_nll_kernel(%arg0: i32, %arg1: memref<14x1x128xf32, #tpu.memory_space<vmem>>, %arg2: memref<4x1x128xf32, #tpu.memory_space<vmem>>, %arg3: memref<1x128xf32, #tpu.memory_space<vmem>>) attributes {dimension_semantics = [#tpu.dimension_semantics<parallel>], iteration_bounds = array<i64: 1>, scalar_prefetch = 0 : i64, scratch_operands = 0 : i64, tpu.core_type = #tpu.core_type<tc>, window_params = [{transform_indices = @transform_0, window_bounds = array<i64: 14, 1, 128>}, {transform_indices = @transform_1, window_bounds = array<i64: 4, 1, 128>}, {transform_indices = @transform_2, window_bounds = array<i64: 1, 128>}]} {
    %c0 = arith.constant 0 : index
    %c0_0 = arith.constant 0 : index
    %c0_1 = arith.constant 0 : index
    %0 = vector.load %arg1[%c0, %c0_0, %c0_1] : memref<14x1x128xf32, #tpu.memory_space<vmem>>, vector<14x1x128xf32>
    %c0_2 = arith.constant 0 : index
    %c0_3 = arith.constant 0 : index
    %c0_4 = arith.constant 0 : index
    %1 = vector.load %arg2[%c0_2, %c0_3, %c0_4] : memref<4x1x128xf32, #tpu.memory_space<vmem>>, vector<4x1x128xf32>
    %2 = vector.extract_strided_slice %0 {offsets = [0, 0, 0], sizes = [4, 1, 128], strides = [1, 1, 1]} : vector<14x1x128xf32> to vector<4x1x128xf32>
    %3 = arith.subf %1, %2 : vector<4x1x128xf32>
    %4 = vector.extract_strided_slice %0 {offsets = [4, 0, 0], sizes = [4, 1, 128], strides = [1, 1, 1]} : vector<14x1x128xf32> to vector<4x1x128xf32>
    %5 = math.exp %4 : vector<4x1x128xf32>
    %cst = arith.constant 0.000000e+00 : f32
    %6 = vector.broadcast %cst : f32 to vector<4x1x128xf32>
    %7 = arith.maximumf %5, %6 : vector<4x1x128xf32>
    %8 = vector.broadcast %cst : f32 to vector<4x1x128xf32>
    %9 = arith.subf %5, %8 : vector<4x1x128xf32>
    %10 = arith.cmpf one, %9, %9 : vector<4x1x128xf32>
    %11 = vector.broadcast %cst : f32 to vector<4x1x128xf32>
    %12 = arith.addf %5, %11 : vector<4x1x128xf32>
    %13 = math.absf %9 : vector<4x1x128xf32>
    %cst_5 = arith.constant 0.000000e+00 : f32
    %14 = vector.broadcast %cst_5 : f32 to vector<4x1x128xf32>
    %15 = arith.subf %14, %13 : vector<4x1x128xf32>
    %16 = math.exp %15 : vector<4x1x128xf32>
    %17 = math.log1p %16 : vector<4x1x128xf32>
    %18 = arith.addf %7, %17 : vector<4x1x128xf32>
    %19 = arith.select %10, %12, %18 : vector<4x1x128xi1>, vector<4x1x128xf32>
    %20 = math.log %19 : vector<4x1x128xf32>
    %21 = tpu.reciprocal %19 {approx = true} : vector<4x1x128xf32> -> vector<4x1x128xf32>
    %22 = arith.mulf %19, %21 : vector<4x1x128xf32>
    %cst_6 = arith.constant 2.000000e+00 : f32
    %23 = vector.broadcast %cst_6 : f32 to vector<4x1x128xf32>
    %24 = arith.subf %23, %22 : vector<4x1x128xf32>
    %25 = arith.mulf %21, %24 : vector<4x1x128xf32>
    %26 = vector.extract_strided_slice %0 {offsets = [8, 0, 0], sizes = [6, 1, 128], strides = [1, 1, 1]} : vector<14x1x128xf32> to vector<6x1x128xf32>
    %27 = math.exp %26 : vector<6x1x128xf32>
    %cst_7 = arith.constant 0.000000e+00 : f32
    %28 = vector.broadcast %cst_7 : f32 to vector<1x128xf32>
    %29 = vector.extract_strided_slice %3 {offsets = [0, 0, 0], sizes = [1, 1, 128], strides = [1, 1, 1]} : vector<4x1x128xf32> to vector<1x1x128xf32>
    %30 = vector.shape_cast %29 : vector<1x1x128xf32> to vector<1x128xf32>
    %31 = vector.extract_strided_slice %25 {offsets = [0, 0, 0], sizes = [1, 1, 128], strides = [1, 1, 1]} : vector<4x1x128xf32> to vector<1x1x128xf32>
    %32 = vector.shape_cast %31 : vector<1x1x128xf32> to vector<1x128xf32>
    %33 = arith.mulf %30, %32 : vector<1x128xf32>
    %34 = arith.mulf %33, %33 : vector<1x128xf32>
    %35 = arith.addf %28, %34 : vector<1x128xf32>
    %36 = vector.extract_strided_slice %3 {offsets = [1, 0, 0], sizes = [1, 1, 128], strides = [1, 1, 1]} : vector<4x1x128xf32> to vector<1x1x128xf32>
    %37 = vector.shape_cast %36 : vector<1x1x128xf32> to vector<1x128xf32>
    %38 = vector.extract_strided_slice %27 {offsets = [0, 0, 0], sizes = [1, 1, 128], strides = [1, 1, 1]} : vector<6x1x128xf32> to vector<1x1x128xf32>
    %39 = vector.shape_cast %38 : vector<1x1x128xf32> to vector<1x128xf32>
    %40 = arith.mulf %39, %33 : vector<1x128xf32>
    %41 = arith.subf %37, %40 : vector<1x128xf32>
    %42 = vector.extract_strided_slice %25 {offsets = [1, 0, 0], sizes = [1, 1, 128], strides = [1, 1, 1]} : vector<4x1x128xf32> to vector<1x1x128xf32>
    %43 = vector.shape_cast %42 : vector<1x1x128xf32> to vector<1x128xf32>
    %44 = arith.mulf %41, %43 : vector<1x128xf32>
    %45 = arith.mulf %44, %44 : vector<1x128xf32>
    %46 = arith.addf %35, %45 : vector<1x128xf32>
    %47 = vector.extract_strided_slice %3 {offsets = [2, 0, 0], sizes = [1, 1, 128], strides = [1, 1, 1]} : vector<4x1x128xf32> to vector<1x1x128xf32>
    %48 = vector.shape_cast %47 : vector<1x1x128xf32> to vector<1x128xf32>
    %49 = vector.extract_strided_slice %27 {offsets = [1, 0, 0], sizes = [1, 1, 128], strides = [1, 1, 1]} : vector<6x1x128xf32> to vector<1x1x128xf32>
    %50 = vector.shape_cast %49 : vector<1x1x128xf32> to vector<1x128xf32>
    %51 = arith.mulf %50, %33 : vector<1x128xf32>
    %52 = arith.subf %48, %51 : vector<1x128xf32>
    %53 = vector.extract_strided_slice %27 {offsets = [2, 0, 0], sizes = [1, 1, 128], strides = [1, 1, 1]} : vector<6x1x128xf32> to vector<1x1x128xf32>
    %54 = vector.shape_cast %53 : vector<1x1x128xf32> to vector<1x128xf32>
    %55 = arith.mulf %54, %44 : vector<1x128xf32>
    %56 = arith.subf %52, %55 : vector<1x128xf32>
    %57 = vector.extract_strided_slice %25 {offsets = [2, 0, 0], sizes = [1, 1, 128], strides = [1, 1, 1]} : vector<4x1x128xf32> to vector<1x1x128xf32>
    %58 = vector.shape_cast %57 : vector<1x1x128xf32> to vector<1x128xf32>
    %59 = arith.mulf %56, %58 : vector<1x128xf32>
    %60 = arith.mulf %59, %59 : vector<1x128xf32>
    %61 = arith.addf %46, %60 : vector<1x128xf32>
    %62 = vector.extract_strided_slice %3 {offsets = [3, 0, 0], sizes = [1, 1, 128], strides = [1, 1, 1]} : vector<4x1x128xf32> to vector<1x1x128xf32>
    %63 = vector.shape_cast %62 : vector<1x1x128xf32> to vector<1x128xf32>
    %64 = vector.extract_strided_slice %27 {offsets = [3, 0, 0], sizes = [1, 1, 128], strides = [1, 1, 1]} : vector<6x1x128xf32> to vector<1x1x128xf32>
    %65 = vector.shape_cast %64 : vector<1x1x128xf32> to vector<1x128xf32>
    %66 = arith.mulf %65, %33 : vector<1x128xf32>
    %67 = arith.subf %63, %66 : vector<1x128xf32>
    %68 = vector.extract_strided_slice %27 {offsets = [4, 0, 0], sizes = [1, 1, 128], strides = [1, 1, 1]} : vector<6x1x128xf32> to vector<1x1x128xf32>
    %69 = vector.shape_cast %68 : vector<1x1x128xf32> to vector<1x128xf32>
    %70 = arith.mulf %69, %44 : vector<1x128xf32>
    %71 = arith.subf %67, %70 : vector<1x128xf32>
    %72 = vector.extract_strided_slice %27 {offsets = [5, 0, 0], sizes = [1, 1, 128], strides = [1, 1, 1]} : vector<6x1x128xf32> to vector<1x1x128xf32>
    %73 = vector.shape_cast %72 : vector<1x1x128xf32> to vector<1x128xf32>
    %74 = arith.mulf %73, %59 : vector<1x128xf32>
    %75 = arith.subf %71, %74 : vector<1x128xf32>
    %76 = vector.extract_strided_slice %25 {offsets = [3, 0, 0], sizes = [1, 1, 128], strides = [1, 1, 1]} : vector<4x1x128xf32> to vector<1x1x128xf32>
    %77 = vector.shape_cast %76 : vector<1x1x128xf32> to vector<1x128xf32>
    %78 = arith.mulf %75, %77 : vector<1x128xf32>
    %79 = arith.mulf %78, %78 : vector<1x128xf32>
    %80 = arith.addf %61, %79 : vector<1x128xf32>
    %cst_8 = arith.constant dense<0.000000e+00> : vector<1x128xf32>
    %81 = vector.multi_reduction <add>, %20, %cst_8 [0] : vector<4x1x128xf32> to vector<1x128xf32>
    %cst_9 = arith.constant 7.35150814 : f32
    %82 = vector.broadcast %cst_9 : f32 to vector<1x128xf32>
    %83 = arith.addf %80, %82 : vector<1x128xf32>
    %cst_10 = arith.constant 5.000000e-01 : f32
    %84 = vector.broadcast %cst_10 : f32 to vector<1x128xf32>
    %85 = arith.mulf %84, %83 : vector<1x128xf32>
    %86 = arith.addf %85, %81 : vector<1x128xf32>
    %c0_11 = arith.constant 0 : index
    %c0_12 = arith.constant 0 : index
    %87 = vector.load %arg3[%c0_11, %c0_12] : memref<1x128xf32, #tpu.memory_space<vmem>>, vector<1x128xf32>
    tpu.vector_store %arg3[%c0_11, %c0_12], %86 {strides = array<i32>} : memref<1x128xf32, #tpu.memory_space<vmem>>, vector<1x128xf32>,
    return
  }
  func.func @transform_0(%arg0: i32) -> (i32, i32, i32) {
    %c0_i32 = arith.constant 0 : i32
    %c0_i32_0 = arith.constant 0 : i32
    %c0_i32_1 = arith.constant 0 : i32
    return %c0_i32, %arg0, %c0_i32_0 : i32, i32, i32
  }
  func.func @transform_1(%arg0: i32) -> (i32, i32, i32) {
    %c0_i32 = arith.constant 0 : i32
    %c0_i32_0 = arith.constant 0 : i32
    %c0_i32_1 = arith.constant 0 : i32
    return %c0_i32, %arg0, %c0_i32_0 : i32, i32, i32
  }
  func.func @transform_2(%arg0: i32) -> (i32, i32) {
    %c0_i32 = arith.constant 0 : i32
    %c0_i32_0 = arith.constant 0 : i32
    return %arg0, %c0_i32 : i32, i32
  }
}

</mosaic_0001>

<llo_original>
// kernel: tpu_custom_call.1
$region0: #{tpu_custom_call.1}
  #allocation0 [shape = 'u32[]', space=smem, size = 0x4, offset = 0x4, fixed_abs, tag = 'smem constant byte address 0x4 - core index']
  #allocation1 [shape = 'u32[144,128]{1,0:T(1,128)}', space=vmem, size = 0x12000, scoped, tag = 'internal scratch']
  %s0 = inlined_call_operand.hbm [shape: f32[14,1,128], index: 0, kind: input, shape index: {}]
  %s1 = inlined_call_operand.hbm [shape: f32[4,1,128], index: 1, kind: input, shape index: {}]
  %s2 = inlined_call_operand.hbm [shape: f32[1,128], index: 2, kind: output, shape index: {}]
  %s3 = sld [smem:[#allocation0]]
  $region26: #{tpu_custom_call.1} parent=0
    _
  %s5 = ssub.s32 1, %s3
  %s6 = scalar_select 0, %s5, %s3
  $region1: #{tpu_custom_call.1} parent=0
    #allocation2 [shape = 'u8[7168]{0}', space=vmem, size = 0x1c00, scoped, tag = 'input window, operand 0, single buffered']
    #allocation3 [shape = 's32[1]{0}', space=sflag, size = 0x4, scoped, tag = 'scoped memory for tpu_custom_call.1']
    #allocation4 [shape = 's32[1]{0}', space=sflag, size = 0x4, scoped, tag = 'scoped memory for tpu_custom_call.1']
    #allocation5 [shape = 'u8[2048]{0}', space=vmem, size = 0x800, scoped, tag = 'input window, operand 1, single buffered']
    #allocation6 [shape = 's32[1]{0}', space=sflag, size = 0x4, scoped, tag = 'scoped memory for tpu_custom_call.1']
    #allocation7 [shape = 'u8[512]{0}', space=vmem, size = 0x400, scoped, tag = 'output window, operand 0, single buffered']
    %7 = vsyncpa [#allocation3], 0
    %8 = vsyncpa [#allocation6], 0
    %9 = vsyncpa [#allocation4], 0
    // Predicated region
    $region2: #{tpu_custom_call.1} parent=1 // pred_check
      _
    $region3: #{tpu_custom_call.1} parent=1 // pred_check_branch
      %11 = sbr.rel (0) target = $region5
    $region4: #{tpu_custom_call.1} parent=1 // pred_region
      %s13 = ssub.s32 224, 224
      %14 = vsyncadd [#allocation3], %s13
      %s15 = sshll.u32 [#allocation2], 4
      %s16 = int_to_ptr.vmem [resolvable:$true] %s15
      %21 = dma.hbm_to_vmem [thread:$0]  %s0, 224, %s16, [#allocation3], 16, 16, 1
    $region5: #{tpu_custom_call.1} parent=1 // pred_fallthru
      _
    // Predicated region
    $region6: #{tpu_custom_call.1} parent=1 // pred_check
      _
    $region7: #{tpu_custom_call.1} parent=1 // pred_check_branch
      %23 = sbr.rel (0) target = $region9
    $region8: #{tpu_custom_call.1} parent=1 // pred_region
      %s25 = ssub.s32 64, 64
      %26 = vsyncadd [#allocation6], %s25
      %s27 = sshll.u32 [#allocation5], 4
      %s28 = int_to_ptr.vmem [resolvable:$true] %s27
      %33 = dma.hbm_to_vmem [thread:$0]  %s1, 64, %s28, [#allocation6], 16, 16, 1
    $region9: #{tpu_custom_call.1} parent=1 // pred_fallthru
      _
    // Predicated region
    $region10: #{tpu_custom_call.1} parent=1 // pred_check
      _
    $region11: #{tpu_custom_call.1} parent=1 // pred_check_branch
      %35 = sbr.rel (0) target = $region13
    $region12: #{tpu_custom_call.1} parent=1 // pred_region
      %36 = dma.done [#allocation3], 224
    $region13: #{tpu_custom_call.1} parent=1 // pred_fallthru
      _
    // Predicated region
    $region14: #{tpu_custom_call.1} parent=1 // pred_check
      _
    $region15: #{tpu_custom_call.1} parent=1 // pred_check_branch
      %38 = sbr.rel (0) target = $region17
    $region16: #{tpu_custom_call.1} parent=1 // pred_region
      %39 = dma.done [#allocation6], 64
    $region17: #{tpu_custom_call.1} parent=1 // pred_fallthru
      _
    %v40 = vld [vmem:[#allocation2] sm:$0x1]
    %v41 = vld [vmem:[#allocation2 + $0x1] sm:$0x1]
    %v42 = vld [vmem:[#allocation2 + $0x2] sm:$0x1]
    %v43 = vld [vmem:[#allocation2 + $0x3] sm:$0x1]
    %v44 = vld [vmem:[#allocation2 + $0x4] sm:$0x1]
    %v45 = vld [vmem:[#allocation2 + $0x5] sm:$0x1]
    %v46 = vld [vmem:[#allocation2 + $0x6] sm:$0x1]
    %v47 = vld [vmem:[#allocation2 + $0x7] sm:$0x1]
    %v48 = vld [vmem:[#allocation2 + $0x8] sm:$0x1]
    %v49 = vld [vmem:[#allocation2 + $0x9] sm:$0x1]
    %v50 = vld [vmem:[#allocation2 + $0xa] sm:$0x1]
    %v51 = vld [vmem:[#allocation2 + $0xb] sm:$0x1]
    %v52 = vld [vmem:[#allocation2 + $0xc] sm:$0x1]
    %v53 = vld [vmem:[#allocation2 + $0xd] sm:$0x1]
    %v54 = vld [vmem:[#allocation5] sm:$0x1]
    %v55 = vld [vmem:[#allocation5 + $0x1] sm:$0x1]
    %v56 = vld [vmem:[#allocation5 + $0x2] sm:$0x1]
    %v57 = vld [vmem:[#allocation5 + $0x3] sm:$0x1]
    %v58 = vsub.f32 %v54, %v40
    %v59 = vsub.f32 %v55, %v41
    %v60 = vsub.f32 %v56, %v42
    %v61 = vsub.f32 %v57, %v43
    %v62 = vmul.f32 %v44, 1.442695
    %v63 = vpow.pop %v62
    %v64 = vmul.f32 %v45, 1.442695
    %v65 = vpow.pop %v64
    %v66 = vmul.f32 %v46, 1.442695
    %v67 = vpow.pop %v66
    %v68 = vmul.f32 %v47, 1.442695
    %v69 = vpow.pop %v68
    %v70 = vmax.f32 %v63, 0.0
    %v71 = vmax.f32 %v65, 0.0
    %v72 = vmax.f32 %v67, 0.0
    %v73 = vmax.f32 %v69, 0.0
    %vm74 = vcmp.ne.f32.partialorder %v63, %v63
    %vm75 = vcmp.ne.f32.partialorder %v65, %v65
    %vm76 = vcmp.ne.f32.partialorder %v67, %v67
    %vm77 = vcmp.ne.f32.partialorder %v69, %v69
    %v78 = vadd.f32 %v63, 0.0
    %v79 = vadd.f32 %v65, 0.0
    %v80 = vadd.f32 %v67, 0.0
    %v81 = vadd.f32 %v69, 0.0
    %v82 = vand.u32 2147483647, %v63
    %v83 = vand.u32 2147483647, %v65
    %v84 = vand.u32 2147483647, %v67
    %v85 = vand.u32 2147483647, %v69
    %v86 = vsub.f32 0.0, %v82
    %v87 = vsub.f32 0.0, %v83
    %v88 = vsub.f32 0.0, %v84
    %v89 = vsub.f32 0.0, %v85
    %v90 = vmul.f32 %v86, 1.442695
    %v91 = vpow.pop %v90
    %v92 = vmul.f32 %v87, 1.442695
    %v93 = vpow.pop %v92
    %v94 = vmul.f32 %v88, 1.442695
    %v95 = vpow.pop %v94
    %v96 = vmul.f32 %v89, 1.442695
    %v97 = vpow.pop %v96
    %v98 = vadd.f32 %v91, 1.0
    %v99 = vlog2.pop %v98
    %v100 = vmul.f32 %v99, 0.6931472
    %v101 = vmul.f32 -0.5, %v91
    %v102 = vadd.f32 %v101, 1.0
    %v103 = vmul.f32 %v102, %v91
    %v104 = vand.u32 2147483647, %v91
    %vm105 = vcmp.lt.f32.partialorder %v104, 0.0004427343
    %v106 = vsel %vm105, %v103, %v100
    %v107 = vadd.f32 %v93, 1.0
    %v108 = vlog2.pop %v107
    %v109 = vmul.f32 %v108, 0.6931472
    %v110 = vmul.f32 -0.5, %v93
    %v111 = vadd.f32 %v110, 1.0
    %v112 = vmul.f32 %v111, %v93
    %v113 = vand.u32 2147483647, %v93
    %vm114 = vcmp.lt.f32.partialorder %v113, 0.0004427343
    %v115 = vsel %vm114, %v112, %v109
    %v116 = vadd.f32 %v95, 1.0
    %v117 = vlog2.pop %v116
    %v118 = vmul.f32 %v117, 0.6931472
    %v119 = vmul.f32 -0.5, %v95
    %v120 = vadd.f32 %v119, 1.0
    %v121 = vmul.f32 %v120, %v95
    %v122 = vand.u32 2147483647, %v95
    %vm123 = vcmp.lt.f32.partialorder %v122, 0.0004427343
    %v124 = vsel %vm123, %v121, %v118
    %v125 = vadd.f32 %v97, 1.0
    %v126 = vlog2.pop %v125
    %v127 = vmul.f32 %v126, 0.6931472
    %v128 = vmul.f32 -0.5, %v97
    %v129 = vadd.f32 %v128, 1.0
    %v130 = vmul.f32 %v129, %v97
    %v131 = vand.u32 2147483647, %v97
    %vm132 = vcmp.lt.f32.partialorder %v131, 0.0004427343
    %v133 = vsel %vm132, %v130, %v127
    %v134 = vadd.f32 %v70, %v106
    %v135 = vadd.f32 %v71, %v115
    %v136 = vadd.f32 %v72, %v124
    %v137 = vadd.f32 %v73, %v133
    %v138 = vsel %vm74, %v78, %v134
    %v139 = vsel %vm75, %v79, %v135
    %v140 = vsel %vm76, %v80, %v136
    %v141 = vsel %vm77, %v81, %v137
    %v142 = vlog2.pop %v138
    %v143 = vmul.f32 %v142, 0.6931472
    %v144 = vlog2.pop %v139
    %v145 = vmul.f32 %v144, 0.6931472
    %v146 = vlog2.pop %v140
    %v147 = vmul.f32 %v146, 0.6931472
    %v148 = vlog2.pop %v141
    %v149 = vmul.f32 %v148, 0.6931472
    %v150 = vrcp.pop %v138
    %v151 = vrcp.pop %v139
    %v152 = vrcp.pop %v140
    %v153 = vrcp.pop %v141
    %v154 = vmul.f32 %v138, %v150
    %v155 = vmul.f32 %v139, %v151
    %v156 = vmul.f32 %v140, %v152
    %v157 = vmul.f32 %v141, %v153
    %v158 = vsub.f32 2.0, %v154
    %v159 = vsub.f32 2.0, %v155
    %v160 = vsub.f32 2.0, %v156
    %v161 = vsub.f32 2.0, %v157
    %v162 = vmul.f32 %v150, %v158
    %v163 = vmul.f32 %v151, %v159
    %v164 = vmul.f32 %v152, %v160
    %v165 = vmul.f32 %v153, %v161
    %v166 = vmul.f32 %v48, 1.442695
    %v167 = vpow.pop %v166
    %v168 = vmul.f32 %v49, 1.442695
    %v169 = vpow.pop %v168
    %v170 = vmul.f32 %v50, 1.442695
    %v171 = vpow.pop %v170
    %v172 = vmul.f32 %v51, 1.442695
    %v173 = vpow.pop %v172
    %v174 = vmul.f32 %v52, 1.442695
    %v175 = vpow.pop %v174
    %v176 = vmul.f32 %v53, 1.442695
    %v177 = vpow.pop %v176
    %v178 = vmul.f32 %v58, %v162
    %v179 = vmul.f32 %v178, %v178
    %v180 = vadd.f32 %v179, 0.0
    %v181 = vmul.f32 %v167, %v178
    %v182 = vsub.f32 %v59, %v181
    %v183 = vmul.f32 %v182, %v163
    %v184 = vmul.f32 %v183, %v183
    %v185 = vadd.f32 %v180, %v184
    %v186 = vmul.f32 %v169, %v178
    %v187 = vsub.f32 %v60, %v186
    %v188 = vmul.f32 %v171, %v183
    %v189 = vsub.f32 %v187, %v188
    %v190 = vmul.f32 %v189, %v164
    %v191 = vmul.f32 %v190, %v190
    %v192 = vadd.f32 %v185, %v191
    %v193 = vmul.f32 %v173, %v178
    %v194 = vsub.f32 %v61, %v193
    %v195 = vmul.f32 %v175, %v183
    %v196 = vsub.f32 %v194, %v195
    %v197 = vmul.f32 %v177, %v190
    %v198 = vsub.f32 %v196, %v197
    %v199 = vmul.f32 %v198, %v165
    %v200 = vmul.f32 %v199, %v199
    %v201 = vadd.f32 %v192, %v200
    %vm202 = vcmask 1040384
    %v203 = vsel %vm202, %v143, 0.0
    %v204 = vsel %vm202, %v145, 0.0
    %v205 = vadd.f32 %v203, %v204
    %v206 = vsel %vm202, %v147, 0.0
    %v207 = vadd.f32 %v205, %v206
    %v208 = vsel %vm202, %v149, 0.0
    %v209 = vadd.f32 %v207, %v208
    %v210 = vadd.f32 %v201, 7.351508
    %v211 = vmul.f32 %v210, 0.5
    %v212 = vadd.f32 %v211, %v209
    %213 = vst [vmem:[#allocation7] sm:$0x1] %v212
    // Predicated region
    $region18: #{tpu_custom_call.1} parent=1 // pred_check
      _
    $region19: #{tpu_custom_call.1} parent=1 // pred_check_branch
      %215 = sbr.rel (0) target = $region21
    $region20: #{tpu_custom_call.1} parent=1 // pred_region
      %s217 = ssub.s32 16, 16
      %218 = vsyncadd [#allocation4], %s217
      %s220 = sshll.u32 [#allocation7], 4
      %s221 = int_to_ptr.vmem [resolvable:$true] %s220
      %223 = dma.vmem_to_hbm [thread:$0]  %s221, 16, %s2, [#allocation4]
    $region21: #{tpu_custom_call.1} parent=1 // pred_fallthru
      _
    // Predicated region
    $region22: #{tpu_custom_call.1} parent=1 // pred_check
      _
    $region23: #{tpu_custom_call.1} parent=1 // pred_check_branch
      %225 = sbr.rel (0) target = $region25
    $region24: #{tpu_custom_call.1} parent=1 // pred_region
      %226 = dma.done [#allocation4], 16
    $region25: #{tpu_custom_call.1} parent=1 // pred_fallthru
      _
    %227 = vsyncpa [#allocation3], 1
    %228 = vsyncpa [#allocation6], 1
    %229 = vsyncpa [#allocation4], 1

</llo_original>
